<compile_context>
chip_gen: v6e
topology: v6e:2x2x1
jax: 0.10.0
libtpu: 0.0.40
codegen_flags: <defaults>
</compile_context>

<pallas_src>
import functools

import jax
import jax.numpy as jnp
from jax import lax
from jax.experimental import pallas as pl
from jax.experimental.pallas import tpu as pltpu

_LANE = 128


def _round_up(x, m):
    return (x + m - 1) // m * m


def pcen_kernel(lens_ref, xs_ref, params_ref, out_ref, carry_ref, *,
                floor, sub, t_tile):
    """One (batch, feature-tile, time-tile) grid step.

    lens_ref:   (B,) int32 SMEM      valid frame count per batch element
    xs_ref:     (t_tile, D_TILE)     input energies for this tile
    params_ref: (4, D_TILE)          rows = [smooth, alpha, delta, root]
    out_ref:    (t_tile, D_TILE)
    carry_ref:  (1, D_TILE) f32 VMEM EMA state of the last frame of the
                                     previous time tile for this (b, d).
    """
    D = xs_ref.shape[-1]
    b = pl.program_id(0)
    t_idx = pl.program_id(2)
    tile_start = t_idx * t_tile
    length = lens_ref[b]

    # ---- per-feature parameters (once per grid step) ----------------------
    s = jnp.clip(params_ref[pl.ds(0, 1), :], 0.0, 1.0)       # (1, D)
    alpha = jnp.minimum(params_ref[pl.ds(1, 1), :], 1.0)
    neg_alpha = -alpha                                        # fold the divide
    delta = params_ref[pl.ds(2, 1), :]
    root = jnp.maximum(params_ref[pl.ds(3, 1), :], 1.0)
    one_over_root = 1.0 / root
    delta_comp = delta ** one_over_root                       # delta^(1/root)

    a = 1.0 - s                                               # EMA decay
    n_levels = sub.bit_length() - 1                           # log2(sub)
    apows = [a]                                               # a^(2^i)
    for _ in range(n_levels - 1):
        apows.append(apows[-1] * apows[-1])

    # Row index along sublanes; a^(k+1) per row built from {a^(2^i)} with
    # bit-selects (VPU only, keeps the EUP budget for the inner-loop pows).
    row = lax.broadcasted_iota(jnp.int32, (sub, D), 0)
    a_row = jnp.ones((sub, D), jnp.float32)
    for i, apow in enumerate(apows):
        a_row = a_row * jnp.where((row & (1 << i)) != 0, apow, 1.0)
    a_carry = a_row * a                                       # a^(row+1)

    # Boundary condition M_0 = xm_0: run the recurrence with a pre-state equal
    # to the (masked) first frame, since a*x0 + s*x0 = x0.
    @pl.when(t_idx == 0)
    def _():
        x0 = xs_ref[pl.ds(0, 1), :].astype(jnp.float32)
        carry_ref[...] = x0 * jnp.where(length > 0, 1.0, 0.0)

    def scan_block(start, carry):
        # carry: (1, D) EMA state of the last frame before this sub-block.
        t0 = tile_start + start
        xblk = xs_ref[pl.ds(start, sub), :].astype(jnp.float32)   # (sub, D)
        valid = (row + t0) < length                               # iota mask
        xm = jnp.where(valid, xblk, 0.0)

        # Blocked first-order IIR: inclusive weighted scan of b_k = s*xm_k with
        # coefficient a across the sublanes -> log2(sub) shifted multiply-adds.
        y = s * xm
        for i, apow in enumerate(apows):
            sh = 1 << i
            shifted = pltpu.roll(y, sh, axis=0)            # y[k - sh] (wraps)
            shifted = jnp.where(row >= sh, shifted, 0.0)   # zero-fill the wrap
            y = y + apow * shifted

        m = a_carry * carry + y                    # EMA state, sub frames
        new_carry = m[sub - 1:sub, :]              # (1, D) last frame's state

        M = jnp.where(valid, m, 0.0)               # masked_fill on the EMA
        out = (xm * (floor + M) ** neg_alpha + delta) ** one_over_root \
            - delta_comp
        out_ref[pl.ds(start, sub), :] = out.astype(out_ref.dtype)
        return new_carry

    nblocks = t_tile // sub
    carry0 = carry_ref[...]

    def body(tb, carry):
        return scan_block(pl.multiple_of(tb * sub, sub), carry)

    carry_final = lax.fori_loop(0, nblocks, body, carry0,
                                unroll=min(nblocks, 8))
    carry_ref[...] = carry_final


def pcen_forward(xs, xs_mask, smooth, alpha, delta, root, *, floor=1e-6):
    """xs: (B, T, D); xs_mask: (B, 1, T) bool (prefix padding mask).

    Returns (B, T, D), dtype of xs.
    """
    B, T, D = xs.shape
    # Sublane block: dense packed stores for bf16 need 16 rows per block.
    sub = 16 if xs.dtype == jnp.bfloat16 else 8

    # Feature tiling: lane-dense, at most 512 lanes per grid step.
    D_pad = _round_up(max(D, _LANE), _LANE)
    d_tile = D_pad if D_pad <= 512 else 512
    D_pad = _round_up(D_pad, d_tile)

    # Time tiling: bounds VMEM per grid step and restores pipeline overlap.
    T_pad = _round_up(max(T, sub), sub)
    t_tile = T_pad if T_pad <= 256 else 256
    T_pad = _round_up(T_pad, t_tile)

    xs_p = xs
    if T_pad != T or D_pad != D:
        xs_p = jnp.pad(xs, ((0, 0), (0, T_pad - T), (0, D_pad - D)))

    # Valid frame count per batch element.  Assumes xs_mask is the standard
    # prefix/length padding mask (as produced from sequence lengths).
    lengths = jnp.sum(xs_mask.astype(jnp.int32), axis=(1, 2)).astype(jnp.int32)

    def prep(p, fill):
        p = p.reshape(1, D).astype(jnp.float32)
        if D_pad != D:
            p = jnp.pad(p, ((0, 0), (0, D_pad - D)), constant_values=fill)
        return p

    # All four per-feature parameters in one (4, D_pad) tile (single DMA).
    # Pad values keep the padded feature columns finite (their output is 0).
    params = jnp.concatenate(
        [prep(smooth, 0.0), prep(alpha, 1.0), prep(delta, 1.0), prep(root, 1.0)],
        axis=0)

    kernel = functools.partial(pcen_kernel, floor=float(floor), sub=sub,
                               t_tile=t_tile)

    grid = (B, D_pad // d_tile, T_pad // t_tile)

    out = pl.pallas_call(
        kernel,
        out_shape=jax.ShapeDtypeStruct((B, T_pad, D_pad), xs.dtype),
        grid_spec=pltpu.PrefetchScalarGridSpec(
            num_scalar_prefetch=1,          # lengths -> SMEM
            grid=grid,
            in_specs=[
                pl.BlockSpec((None, t_tile, d_tile),
                             lambda b, d, t, lens: (b, t, d)),      # xs
                pl.BlockSpec((4, d_tile),
                             lambda b, d, t, lens: (0, d)),         # params
            ],
            out_specs=pl.BlockSpec((None, t_tile, d_tile),
                                   lambda b, d, t, lens: (b, t, d)),
            scratch_shapes=[pltpu.VMEM((1, d_tile), jnp.float32)],  # EMA carry
        ),
        compiler_params=pltpu.CompilerParams(
            # Batch and feature tiles are fully independent (incl. the carry);
            # time is the sequential scan axis.
            dimension_semantics=("parallel", "parallel", "arbitrary"),
            # Cap only; per-step VMEM is bounded by the (t_tile, d_tile) tiles.
            vmem_limit_bytes=32 * 1024 * 1024,
        ),
    )(lengths, xs_p, params)

    return out[:, :T, :D]


def pcen_ref(xs, xs_mask, smooth, alpha, delta, root, floor=1e-6):
    """Pure-JAX reference of the same semantics."""
    mask = jnp.transpose(xs_mask, (0, 2, 1)).astype(xs.dtype)   # (B, T, 1)
    xm = xs * mask
    s = jnp.clip(smooth, 0.0, 1.0)

    x_t = jnp.swapaxes(xm, 0, 1)                                # (T, B, D)

    def step(prev, xt):
        m = (1.0 - s) * prev + s * xt
        return m, m

    _, M_rest = lax.scan(step, x_t[0], x_t[1:])
    M = jnp.concatenate([x_t[:1], M_rest], axis=0)
    M = jnp.swapaxes(M, 0, 1) * mask                            # (B, T, D)

    a = jnp.minimum(alpha, 1.0)
    r = jnp.maximum(root, 1.0)
    one_over_root = 1.0 / r
    return (xm / (floor + M) ** a + delta) ** one_over_root \
        - delta ** one_over_root


if __name__ == "__main__":
    key = jax.random.PRNGKey(0)
    k1, k2 = jax.random.split(key)
    floor = 1e-6

    # ---- small shape check (single time tile) ------------------------------
    B, T, D = 2, 8, 32          # batch, time, feat_dim
    xs = jax.random.uniform(k1, (B, T, D), dtype=jnp.float32,
                            minval=0.0, maxval=1.0)
    lengths = jnp.array([T, T - 2], dtype=jnp.int32)
    xs_mask = (jnp.arange(T)[None, :] < lengths[:, None])[:, None, :]  # (B,1,T)

    # Deterministic parameter init, matching Pcen.__init__ constants.
    smooth = jnp.full((D,), 0.04, dtype=jnp.float32)   # smooth_coef
    alpha = jnp.full((D,), 0.96, dtype=jnp.float32)
    delta = jnp.full((D,), 2.0, dtype=jnp.float32)
    root = jnp.full((D,), 2.0, dtype=jnp.float32)

    out = pcen_forward(xs, xs_mask, smooth, alpha, delta, root, floor=floor)
    out = jax.block_until_ready(out)
    ref = pcen_ref(xs, xs_mask, smooth, alpha, delta, root, floor=floor)
    assert out.shape == (B, T, D) and out.dtype == xs.dtype
    err = jnp.max(jnp.abs(out - ref))
    assert jnp.allclose(out, ref, rtol=1e-4, atol=1e-4), f"max err {err}"

    # ---- longer sequence: exercises multiple time tiles + masked prefix ----
    B2, T2, D2 = 2, 300, 80
    xs2 = jax.random.uniform(k2, (B2, T2, D2), dtype=jnp.float32,
                             minval=0.0, maxval=1.0)
    lengths2 = jnp.array([T2, 193], dtype=jnp.int32)
    mask2 = (jnp.arange(T2)[None, :] < lengths2[:, None])[:, None, :]
    smooth2 = jnp.full((D2,), 0.04, dtype=jnp.float32)
    alpha2 = jnp.full((D2,), 0.96, dtype=jnp.float32)
    delta2 = jnp.full((D2,), 2.0, dtype=jnp.float32)
    root2 = jnp.full((D2,), 2.0, dtype=jnp.float32)

    out2 = jax.block_until_ready(
        pcen_forward(xs2, mask2, smooth2, alpha2, delta2, root2, floor=floor))
    ref2 = pcen_ref(xs2, mask2, smooth2, alpha2, delta2, root2, floor=floor)
    err2 = jnp.max(jnp.abs(out2 - ref2))
    assert jnp.allclose(out2, ref2, rtol=1e-4, atol=1e-4), f"max err {err2}"

    print("KERNEL_OK")
</pallas_src>

<mosaic_0001>
module attributes {stable_mosaic.version = 11 : i64} {
  func.func @pcen_kernel(%arg0: i32, %arg1: i32, %arg2: i32, %arg3: memref<2xi32, #tpu.memory_space<smem>>, %arg4: memref<1x8x128xf32, #tpu.memory_space<vmem>>, %arg5: memref<4x128xf32, #tpu.memory_space<vmem>>, %arg6: memref<1x8x128xf32, #tpu.memory_space<vmem>>, %arg7: memref<1x128xf32, #tpu.memory_space<vmem>>) attributes {dimension_semantics = [#tpu.dimension_semantics<parallel>, #tpu.dimension_semantics<parallel>, #tpu.dimension_semantics<arbitrary>], iteration_bounds = array<i64: 2, 1, 1>, scalar_prefetch = 1 : i64, scratch_operands = 1 : i64, tpu.core_type = #tpu.core_type<tc>, window_params = [{transform_indices = @transform_0, window_bounds = array<i64: 1, 8, 128>}, {transform_indices = @transform_1, window_bounds = array<i64: 4, 128>}, {transform_indices = @transform_2, window_bounds = array<i64: 1, 8, 128>}]} {
    %c8_i32 = arith.constant 8 : i32
    %0 = arith.muli %arg2, %c8_i32 : i32
    %1 = arith.index_cast %arg0 : i32 to index
    %2 = memref.load %arg3[%1] : memref<2xi32, #tpu.memory_space<smem>>
    %c0 = arith.constant 0 : index
    %c0_0 = arith.constant 0 : index
    %3 = vector.load %arg5[%c0, %c0_0] : memref<4x128xf32, #tpu.memory_space<vmem>>, vector<1x128xf32>
    %cst = arith.constant 0.000000e+00 : f32
    %cst_1 = arith.constant 1.000000e+00 : f32
    %4 = vector.broadcast %cst : f32 to vector<1x128xf32>
    %5 = arith.maximumf %4, %3 : vector<1x128xf32>
    %6 = vector.broadcast %cst_1 : f32 to vector<1x128xf32>
    %7 = arith.minimumf %6, %5 : vector<1x128xf32>
    %c1 = arith.constant 1 : index
    %c0_2 = arith.constant 0 : index
    %8 = vector.load %arg5[%c1, %c0_2] : memref<4x128xf32, #tpu.memory_space<vmem>>, vector<1x128xf32>
    %cst_3 = arith.constant 1.000000e+00 : f32
    %9 = vector.broadcast %cst_3 : f32 to vector<1x128xf32>
    %10 = arith.minimumf %8, %9 : vector<1x128xf32>
    %cst_4 = arith.constant 0.000000e+00 : f32
    %11 = vector.broadcast %cst_4 : f32 to vector<1x128xf32>
    %12 = arith.subf %11, %10 : vector<1x128xf32>
    %c2 = arith.constant 2 : index
    %c0_5 = arith.constant 0 : index
    %13 = vector.load %arg5[%c2, %c0_5] : memref<4x128xf32, #tpu.memory_space<vmem>>, vector<1x128xf32>
    %c3 = arith.constant 3 : index
    %c0_6 = arith.constant 0 : index
    %14 = vector.load %arg5[%c3, %c0_6] : memref<4x128xf32, #tpu.memory_space<vmem>>, vector<1x128xf32>
    %cst_7 = arith.constant 1.000000e+00 : f32
    %15 = vector.broadcast %cst_7 : f32 to vector<1x128xf32>
    %16 = arith.maximumf %14, %15 : vector<1x128xf32>
    %cst_8 = arith.constant 1.000000e+00 : f32
    %17 = vector.broadcast %cst_8 : f32 to vector<1x128xf32>
    %18 = arith.divf %17, %16 : vector<1x128xf32>
    %19 = math.powf %13, %18 : vector<1x128xf32>
    %cst_9 = arith.constant 1.000000e+00 : f32
    %20 = vector.broadcast %cst_9 : f32 to vector<1x128xf32>
    %21 = arith.subf %20, %7 : vector<1x128xf32>
    %22 = arith.mulf %21, %21 : vector<1x128xf32>
    %23 = arith.mulf %22, %22 : vector<1x128xf32>
    %24 = tpu.iota {dimensions = array<i32: 0>} : vector<8x128xi32>
    %cst_10 = arith.constant 1.000000e+00 : f32
    %25 = vector.broadcast %cst_10 : f32 to vector<8x128xf32>
    %c1_i32 = arith.constant 1 : i32
    %26 = vector.broadcast %c1_i32 : i32 to vector<8x128xi32>
    %27 = arith.andi %24, %26 : vector<8x128xi32>
    %c0_i32 = arith.constant 0 : i32
    %28 = vector.broadcast %c0_i32 : i32 to vector<8x128xi32>
    %29 = arith.cmpi ne, %27, %28 : vector<8x128xi32>
    %cst_11 = arith.constant 1.000000e+00 : f32
    %30 = vector.shape_cast %21 : vector<1x128xf32> to vector<1x128xf32>
    %31 = vector.broadcast %30 : vector<1x128xf32> to vector<8x128xf32>
    %32 = vector.broadcast %cst_11 : f32 to vector<8x128xf32>
    %33 = arith.select %29, %31, %32 : vector<8x128xi1>, vector<8x128xf32>
    %34 = arith.mulf %25, %33 : vector<8x128xf32>
    %c2_i32 = arith.constant 2 : i32
    %35 = vector.broadcast %c2_i32 : i32 to vector<8x128xi32>
    %36 = arith.andi %24, %35 : vector<8x128xi32>
    %c0_i32_12 = arith.constant 0 : i32
    %37 = vector.broadcast %c0_i32_12 : i32 to vector<8x128xi32>
    %38 = arith.cmpi ne, %36, %37 : vector<8x128xi32>
    %cst_13 = arith.constant 1.000000e+00 : f32
    %39 = vector.shape_cast %22 : vector<1x128xf32> to vector<1x128xf32>
    %40 = vector.broadcast %39 : vector<1x128xf32> to vector<8x128xf32>
    %41 = vector.broadcast %cst_13 : f32 to vector<8x128xf32>
    %42 = arith.select %38, %40, %41 : vector<8x128xi1>, vector<8x128xf32>
    %43 = arith.mulf %34, %42 : vector<8x128xf32>
    %c4_i32 = arith.constant 4 : i32
    %44 = vector.broadcast %c4_i32 : i32 to vector<8x128xi32>
    %45 = arith.andi %24, %44 : vector<8x128xi32>
    %c0_i32_14 = arith.constant 0 : i32
    %46 = vector.broadcast %c0_i32_14 : i32 to vector<8x128xi32>
    %47 = arith.cmpi ne, %45, %46 : vector<8x128xi32>
    %cst_15 = arith.constant 1.000000e+00 : f32
    %48 = vector.shape_cast %23 : vector<1x128xf32> to vector<1x128xf32>
    %49 = vector.broadcast %48 : vector<1x128xf32> to vector<8x128xf32>
    %50 = vector.broadcast %cst_15 : f32 to vector<8x128xf32>
    %51 = arith.select %47, %49, %50 : vector<8x128xi1>, vector<8x128xf32>
    %52 = arith.mulf %43, %51 : vector<8x128xf32>
    %53 = vector.broadcast %21 : vector<1x128xf32> to vector<8x128xf32>
    %54 = arith.mulf %52, %53 : vector<8x128xf32>
    %c0_i32_16 = arith.constant 0 : i32
    %55 = arith.cmpi eq, %arg2, %c0_i32_16 : i32
    %56 = arith.extui %55 : i1 to i32
    %c0_i32_17 = arith.constant 0 : i32
    %57 = arith.cmpi ne, %56, %c0_i32_17 : i32
    scf.if %57 {
      %c0_41 = arith.constant 0 : index
      %c0_42 = arith.constant 0 : index
      %c0_43 = arith.constant 0 : index
      %119 = vector.load %arg4[%c0_41, %c0_42, %c0_43] : memref<1x8x128xf32, #tpu.memory_space<vmem>>, vector<1x1x128xf32>
      %120 = vector.shape_cast %119 : vector<1x1x128xf32> to vector<1x128xf32>
      %c0_i32_44 = arith.constant 0 : i32
      %121 = arith.cmpi sgt, %2, %c0_i32_44 : i32
      %cst_45 = arith.constant 1.000000e+00 : f32
      %cst_46 = arith.constant 0.000000e+00 : f32
      %122 = arith.select %121, %cst_45, %cst_46 : f32
      %123 = vector.broadcast %122 : f32 to vector<1x128xf32>
      %124 = arith.mulf %120, %123 : vector<1x128xf32>
      %c0_47 = arith.constant 0 : index
      %c0_48 = arith.constant 0 : index
      %125 = vector.load %arg7[%c0_47, %c0_48] : memref<1x128xf32, #tpu.memory_space<vmem>>, vector<1x128xf32>
      tpu.vector_store %arg7[%c0_47, %c0_48], %124 {strides = array<i32>} : memref<1x128xf32, #tpu.memory_space<vmem>>, vector<1x128xf32>,
    } else {
    }
    %c0_18 = arith.constant 0 : index
    %c0_19 = arith.constant 0 : index
    %58 = vector.load %arg7[%c0_18, %c0_19] : memref<1x128xf32, #tpu.memory_space<vmem>>, vector<1x128xf32>
    %c0_i32_20 = arith.constant 0 : i32
    %c8_i32_21 = arith.constant 8 : i32
    %59 = arith.muli %c0_i32_20, %c8_i32_21 : i32
    %60 = tpu.assume_multiple %59, 8 : i32
    %61 = arith.addi %0, %60 : i32
    %c0_22 = arith.constant 0 : index
    %62 = arith.index_cast %60 : i32 to index
    %c0_23 = arith.constant 0 : index
    %63 = vector.load %arg4[%c0_22, %62, %c0_23] : memref<1x8x128xf32, #tpu.memory_space<vmem>>, vector<1x8x128xf32>
    %64 = vector.shape_cast %63 : vector<1x8x128xf32> to vector<8x128xf32>
    %65 = vector.broadcast %61 : i32 to vector<8x128xi32>
    %66 = arith.addi %24, %65 : vector<8x128xi32>
    %67 = vector.broadcast %2 : i32 to vector<8x128xi32>
    %68 = arith.cmpi slt, %66, %67 : vector<8x128xi32>
    %cst_24 = arith.constant 0.000000e+00 : f32
    %69 = vector.broadcast %cst_24 : f32 to vector<8x128xf32>
    %70 = arith.select %68, %64, %69 : vector<8x128xi1>, vector<8x128xf32>
    %71 = vector.broadcast %7 : vector<1x128xf32> to vector<8x128xf32>
    %72 = arith.mulf %71, %70 : vector<8x128xf32>
    %c1_i32_25 = arith.constant 1 : i32
    %73 = tpu.dynamic_rotate %72 by %c1_i32_25 dim 0 : vector<8x128xf32>, i32 -> vector<8x128xf32>
    %c1_i32_26 = arith.constant 1 : i32
    %74 = vector.broadcast %c1_i32_26 : i32 to vector<8x128xi32>
    %75 = arith.cmpi sge, %24, %74 : vector<8x128xi32>
    %cst_27 = arith.constant 0.000000e+00 : f32
    %76 = vector.broadcast %cst_27 : f32 to vector<8x128xf32>
    %77 = arith.select %75, %73, %76 : vector<8x128xi1>, vector<8x128xf32>
    %78 = vector.broadcast %21 : vector<1x128xf32> to vector<8x128xf32>
    %79 = arith.mulf %78, %77 : vector<8x128xf32>
    %80 = arith.addf %72, %79 : vector<8x128xf32>
    %c2_i32_28 = arith.constant 2 : i32
    %81 = tpu.dynamic_rotate %80 by %c2_i32_28 dim 0 : vector<8x128xf32>, i32 -> vector<8x128xf32>
    %c2_i32_29 = arith.constant 2 : i32
    %82 = vector.broadcast %c2_i32_29 : i32 to vector<8x128xi32>
    %83 = arith.cmpi sge, %24, %82 : vector<8x128xi32>
    %cst_30 = arith.constant 0.000000e+00 : f32
    %84 = vector.broadcast %cst_30 : f32 to vector<8x128xf32>
    %85 = arith.select %83, %81, %84 : vector<8x128xi1>, vector<8x128xf32>
    %86 = vector.broadcast %22 : vector<1x128xf32> to vector<8x128xf32>
    %87 = arith.mulf %86, %85 : vector<8x128xf32>
    %88 = arith.addf %80, %87 : vector<8x128xf32>
    %c4_i32_31 = arith.constant 4 : i32
    %89 = tpu.dynamic_rotate %88 by %c4_i32_31 dim 0 : vector<8x128xf32>, i32 -> vector<8x128xf32>
    %c4_i32_32 = arith.constant 4 : i32
    %90 = vector.broadcast %c4_i32_32 : i32 to vector<8x128xi32>
    %91 = arith.cmpi sge, %24, %90 : vector<8x128xi32>
    %cst_33 = arith.constant 0.000000e+00 : f32
    %92 = vector.broadcast %cst_33 : f32 to vector<8x128xf32>
    %93 = arith.select %91, %89, %92 : vector<8x128xi1>, vector<8x128xf32>
    %94 = vector.broadcast %23 : vector<1x128xf32> to vector<8x128xf32>
    %95 = arith.mulf %94, %93 : vector<8x128xf32>
    %96 = arith.addf %88, %95 : vector<8x128xf32>
    %97 = vector.broadcast %58 : vector<1x128xf32> to vector<8x128xf32>
    %98 = arith.mulf %54, %97 : vector<8x128xf32>
    %99 = arith.addf %98, %96 : vector<8x128xf32>
    %100 = vector.extract_strided_slice %99 {offsets = [7, 0], sizes = [1, 128], strides = [1, 1]} : vector<8x128xf32> to vector<1x128xf32>
    %cst_34 = arith.constant 0.000000e+00 : f32
    %101 = vector.broadcast %cst_34 : f32 to vector<8x128xf32>
    %102 = arith.select %68, %99, %101 : vector<8x128xi1>, vector<8x128xf32>
    %cst_35 = arith.constant 9.99999997E-7 : f32
    %103 = vector.broadcast %cst_35 : f32 to vector<8x128xf32>
    %104 = arith.addf %103, %102 : vector<8x128xf32>
    %105 = vector.broadcast %12 : vector<1x128xf32> to vector<8x128xf32>
    %106 = math.powf %104, %105 : vector<8x128xf32>
    %107 = arith.mulf %70, %106 : vector<8x128xf32>
    %108 = vector.broadcast %13 : vector<1x128xf32> to vector<8x128xf32>
    %109 = arith.addf %107, %108 : vector<8x128xf32>
    %110 = vector.broadcast %18 : vector<1x128xf32> to vector<8x128xf32>
    %111 = math.powf %109, %110 : vector<8x128xf32>
    %112 = vector.broadcast %19 : vector<1x128xf32> to vector<8x128xf32>
    %113 = arith.subf %111, %112 : vector<8x128xf32>
    %c0_36 = arith.constant 0 : index
    %114 = arith.index_cast %60 : i32 to index
    %c0_37 = arith.constant 0 : index
    %115 = vector.load %arg6[%c0_36, %114, %c0_37] : memref<1x8x128xf32, #tpu.memory_space<vmem>>, vector<1x8x128xf32>
    %116 = vector.shape_cast %115 : vector<1x8x128xf32> to vector<8x128xf32>
    %117 = vector.shape_cast %113 : vector<8x128xf32> to vector<1x8x128xf32>
    tpu.vector_store %arg6[%c0_36, %114, %c0_37], %117 {strides = array<i32>} : memref<1x8x128xf32, #tpu.memory_space<vmem>>, vector<1x8x128xf32>,
    %c1_i32_38 = arith.constant 1 : i32
    %c0_39 = arith.constant 0 : index
    %c0_40 = arith.constant 0 : index
    %118 = vector.load %arg7[%c0_39, %c0_40] : memref<1x128xf32, #tpu.memory_space<vmem>>, vector<1x128xf32>
    tpu.vector_store %arg7[%c0_39, %c0_40], %100 {strides = array<i32>} : memref<1x128xf32, #tpu.memory_space<vmem>>, vector<1x128xf32>,
    return
  }
  func.func @transform_0(%arg0: i32, %arg1: i32, %arg2: i32, %arg3: memref<2xi32, #tpu.memory_space<smem>>) -> (i32, i32, i32) {
    %c0_i32 = arith.constant 0 : i32
    return %arg0, %arg2, %arg1 : i32, i32, i32
  }
  func.func @transform_1(%arg0: i32, %arg1: i32, %arg2: i32, %arg3: memref<2xi32, #tpu.memory_space<smem>>) -> (i32, i32) {
    %c0_i32 = arith.constant 0 : i32
    %c0_i32_0 = arith.constant 0 : i32
    return %c0_i32, %arg1 : i32, i32
  }
  func.func @transform_2(%arg0: i32, %arg1: i32, %arg2: i32, %arg3: memref<2xi32, #tpu.memory_space<smem>>) -> (i32, i32, i32) {
    %c0_i32 = arith.constant 0 : i32
    return %arg0, %arg2, %arg1 : i32, i32, i32
  }
}

</mosaic_0001>

<llo_original>
// kernel: tpu_custom_call.1
$region0: #{tpu_custom_call.1}
  #allocation0 [shape = 'u32[]', space=smem, size = 0x4, offset = 0x4, fixed_abs, tag = 'smem constant byte address 0x4 - core index']
  #allocation1 [shape = 'u32[144,128]{1,0:T(1,128)}', space=vmem, size = 0x12000, scoped, tag = 'internal scratch']
  #allocation2 [shape = 'f32[1,128]{1,0:T(1,128)}', space=vmem, size = 0x200, scoped, tag = 'scratch operand']
  #allocation3 [shape = 's32[1]{0}', space=sflag, size = 0x4, scoped, tag = 'scoped memory for tpu_custom_call.1']
  #allocation4 [shape = 'u8[512]{0}', space=smem, size = 0x200, scoped, tag = 'prefetched SMEM operand 0']
  %s0 = inlined_call_operand.hbm [shape: s32[2], index: 0, kind: input, shape index: {}]
  %s1 = inlined_call_operand.hbm [shape: f32[2,8,128], index: 1, kind: input, shape index: {}]
  %s2 = inlined_call_operand.hbm [shape: f32[4,128], index: 2, kind: input, shape index: {}]
  %s3 = inlined_call_operand.hbm [shape: f32[2,8,128], index: 3, kind: output, shape index: {}]
  %s4 = sld [smem:[#allocation0]]
  $region53: #{tpu_custom_call.1} parent=0
    _
  %s6 = ssub.s32 1, %s4
  %s7 = scalar_select 0, %s6, %s4
  %9 = dma.hbm_to_smem %s0, 16, [#allocation4], [#allocation3]
  %10 = dma.done [#allocation3], 16
  %11 = sfence
  $region1: #{tpu_custom_call.1} parent=0
    #allocation5 [shape = 'u8[8192]{0}', space=vmem, size = 0x2000, scoped, tag = 'input window, operand 1']
    #allocation6 [shape = 's32[2]{0}', space=sflag, size = 0x8, scoped, tag = 'scoped memory for tpu_custom_call.1']
    #allocation7 [shape = 's32[2]{0}', space=sflag, size = 0x8, scoped, tag = 'scoped memory for tpu_custom_call.1']
    #allocation8 [shape = 'u8[2048]{0}', space=vmem, size = 0x800, scoped, tag = 'input window, operand 2, single buffered']
    #allocation9 [shape = 's32[1]{0}', space=sflag, size = 0x4, scoped, tag = 'scoped memory for tpu_custom_call.1']
    #allocation10 [shape = 'u8[8192]{0}', space=vmem, size = 0x2000, scoped, tag = 'output window, operand 0']
    %12 = vsyncpa [#allocation6], 0
    %s13 = scalar_lea.sflag [#allocation6], 1
    %14 = vsyncpa %s13, 0
    %15 = vsyncpa [#allocation9], 0
    %16 = vsyncpa [#allocation7], 0
    %s17 = scalar_lea.sflag [#allocation7], 1
    %18 = vsyncpa %s17, 0
    loop: start=0, step=1, limit=4
    $region2: #{tpu_custom_call.1} parent=1 // loop_pre_header
      _
    $region3: #{tpu_custom_call.1} parent=1 // loop_header
      %s20 = sphi 0, %s24
      %p21 = scmp.ge.s32.totalorder %s20, 4
      %s27 = sphi 0, %s46
      %s28 = sphi 0, %s42
      %s29 = sphi 0, %s38
      %s30 = sphi 0, %s27
      %s31 = sphi 0, %s28
      %s32 = sphi 0, %s29
      %s33 = sphi 0, %s30
      %s34 = sphi 0, %s31
      %s35 = sphi 0, %s32
      %s53 = sphi 0, %s55
      %s56 = sphi 0, %s53
      %s57 = sphi 0, %s56
      %s73 = sphi 0, %s57
      %s79 = sphi 0, %s81
      %s82 = sphi 0, %s79
      %s83 = sphi 0, %s82
      %s99 = sphi 0, %s83
      %s109 = sphi 0, %s111
      %s112 = sphi 0, %s109
      %s113 = sphi 0, %s112
      %s129 = sphi 0, %s113
    $region4: #{tpu_custom_call.1} parent=1 // loop_header_branch
      %23 = sbr.rel (%p21) target = $region8
    $region5: #{tpu_custom_call.1} parent=1 // loop_body
      %s25 = ssub.s32 %s20, 1
      %s26 = ssub.s32 %s20, 2
      %s36 = sadd.s32 1, %s29
      %p37 = scmp.ge.s32.totalorder %s36, 1
      %s38 = scalar_select %p37, 0, %s36
      %s39 = sadd.s32 1, %s28
      %s40 = scalar_select %p37, %s39, %s28
      %p41 = scmp.ge.s32.totalorder %s40, 1
      %s42 = scalar_select %p41, 0, %s40
      %s43 = sadd.s32 1, %s27
      %s44 = scalar_select %p41, %s43, %s27
      %p45 = scmp.ge.s32.totalorder %s44, 2
      %s46 = scalar_select %p45, 0, %s44
      %s47 = ssub.s32 %s27, %s46
      %s48 = ssub.s32 %s29, %s38
      %s49 = sor.u32 %s47, %s48
      %s50 = ssub.s32 %s28, %s42
      %s51 = sor.u32 %s49, %s50
      %p52 = scmp.eq.s32.totalorder %s51, 0
      %s54 = sadd.s32 %s53, 1
      %s55 = scalar_select %p52, %s53, %s54
      %p58 = pneg %p52
      %p59 = scmp.eq.s32.totalorder %s20, 1
      %p60 = por %p58, %p59
      %p61 = scmp.ne.s32.totalorder %s53, %s56
      %p62 = scmp.eq.s32.totalorder %s20, 0
      %p63 = por %p61, %p62
      %p64 = scmp.ne.s32.totalorder %s53, %s56
      %p65 = scmp.eq.s32.totalorder %s25, 1
      %p66 = por %p64, %p65
      %p67 = scmp.ne.s32.totalorder %s56, %s57
      %p68 = scmp.eq.s32.totalorder %s25, 0
      %p69 = por %p67, %p68
      %p70 = scmp.ne.s32.totalorder %s56, %s57
      %p71 = scmp.eq.s32.totalorder %s26, 1
      %p72 = por %p70, %p71
      %p74 = scmp.ne.s32.totalorder %s57, %s73
      %p75 = scmp.eq.s32.totalorder %s26, 0
      %p76 = por %p74, %p75
      %s77 = ssub.s32 %s28, %s42
      %p78 = scmp.eq.s32.totalorder %s77, 0
      %s80 = sadd.s32 %s79, 1
      %s81 = scalar_select %p78, %s79, %s80
      %p84 = pneg %p78
      %p85 = scmp.eq.s32.totalorder %s20, 1
      %p86 = por %p84, %p85
      %p87 = scmp.ne.s32.totalorder %s79, %s82
      %p88 = scmp.eq.s32.totalorder %s20, 0
      %p89 = por %p87, %p88
      %p90 = scmp.ne.s32.totalorder %s79, %s82
      %p91 = scmp.eq.s32.totalorder %s25, 1
      %p92 = por %p90, %p91
      %p93 = scmp.ne.s32.totalorder %s82, %s83
      %p94 = scmp.eq.s32.totalorder %s25, 0
      %p95 = por %p93, %p94
      %p96 = scmp.ne.s32.totalorder %s82, %s83
      %p97 = scmp.eq.s32.totalorder %s26, 1
      %p98 = por %p96, %p97
      %p100 = scmp.ne.s32.totalorder %s83, %s99
      %p101 = scmp.eq.s32.totalorder %s26, 0
      %p102 = por %p100, %p101
      %s103 = ssub.s32 %s27, %s46
      %s104 = ssub.s32 %s29, %s38
      %s105 = sor.u32 %s103, %s104
      %s106 = ssub.s32 %s28, %s42
      %s107 = sor.u32 %s105, %s106
      %p108 = scmp.eq.s32.totalorder %s107, 0
      %s110 = sadd.s32 %s109, 1
      %s111 = scalar_select %p108, %s109, %s110
      %p114 = pneg %p108
      %p115 = scmp.eq.s32.totalorder %s20, 1
      %p116 = por %p114, %p115
      %p117 = scmp.ne.s32.totalorder %s109, %s112
      %p118 = scmp.eq.s32.totalorder %s20, 0
      %p119 = por %p117, %p118
      %p120 = scmp.ne.s32.totalorder %s109, %s112
      %p121 = scmp.eq.s32.totalorder %s25, 1
      %p122 = por %p120, %p121
      %p123 = scmp.ne.s32.totalorder %s112, %s113
      %p124 = scmp.eq.s32.totalorder %s25, 0
      %p125 = por %p123, %p124
      %p126 = scmp.ne.s32.totalorder %s112, %s113
      %p127 = scmp.eq.s32.totalorder %s26, 1
      %p128 = por %p126, %p127
      %p130 = scmp.ne.s32.totalorder %s113, %s129
      %p131 = scmp.eq.s32.totalorder %s26, 0
      %p132 = por %p130, %p131
      %p133 = scmp.le.s32.totalorder 1, %s20
      %p134 = scmp.lt.s32.totalorder %s20, 3
      %p135 = pnand %p133, %p134
      %p136 = pneg %p135
      // Predicated region
      $region9: #{tpu_custom_call.1} parent=5 // pred_check
        _
      $region10: #{tpu_custom_call.1} parent=5 // pred_check_branch
        %138 = sbr.rel (%p135) target = $region12
      $region11: #{tpu_custom_call.1} parent=5 // pred_region
        %s139 = ssub.s32 %s20, 1
        // Predicated region
        $region13: #{tpu_custom_call.1} parent=11 // pred_check
          %p140 = pneg %p95
        $region14: #{tpu_custom_call.1} parent=11 // pred_check_branch
          %142 = sbr.rel (%p140) target = $region16
        $region15: #{tpu_custom_call.1} parent=11 // pred_region
          %s144 = ssub.s32 64, 64
          %145 = vsyncadd [#allocation9], %s144
          %s146 = smul.addr %s31, 64
          %s147 = scalar_lea.hbm %s2, %s146
          %s149 = sshll.u32 [#allocation8], 4
          %s150 = int_to_ptr.vmem [resolvable:$true] %s149
          %152 = dma.hbm_to_vmem [thread:$0]  %s147, 64, %s150, [#allocation9]
        $region16: #{tpu_custom_call.1} parent=11 // pred_fallthru
          _
      $region12: #{tpu_custom_call.1} parent=5 // pred_fallthru
        _
      %p153 = scmp.lt.s32.totalorder %s20, 2
      // Predicated region
      $region17: #{tpu_custom_call.1} parent=5 // pred_check
        %p154 = pneg %p153
      $region18: #{tpu_custom_call.1} parent=5 // pred_check_branch
        %156 = sbr.rel (%p154) target = $region20
      $region19: #{tpu_custom_call.1} parent=5 // pred_region
        // Predicated region
        $region21: #{tpu_custom_call.1} parent=19 // pred_check
          %p157 = pneg %p63
        $region22: #{tpu_custom_call.1} parent=19 // pred_check_branch
          %159 = sbr.rel (%p157) target = $region24
        $region23: #{tpu_custom_call.1} parent=19 // pred_region
          %s160 = sand.u32 %s53, 1
          %s161 = scalar_lea.sflag [#allocation6], %s160
          %s162 = sand.u32 %s53, 1
          %s163 = smul.addr %s162, 8
          %s164 = scalar_lea.vmem [#allocation5], %s163
          %s166 = ssub.s32 128, 128
          %167 = vsyncadd %s161, %s166
          %s168 = sadd.s32 %s28, %s29
          %s169 = sadd.s32 %s168, %s27
          %s170 = smul.addr %s169, 128
          %s171 = scalar_lea.hbm %s1, %s170
          %s173 = sshll.u32 %s164, 4
          %s174 = int_to_ptr.vmem [resolvable:$true] %s173
          %176 = dma.hbm_to_vmem [thread:$0]  %s171, 128, %s174, %s161
        $region24: #{tpu_custom_call.1} parent=19 // pred_fallthru
          _
      $region20: #{tpu_custom_call.1} parent=5 // pred_fallthru
        _
      %p177 = scmp.le.s32.totalorder 1, %s20
      %p178 = scmp.lt.s32.totalorder %s20, 3
      %p179 = pnand %p177, %p178
      %p180 = pneg %p179
      // Predicated region
      $region25: #{tpu_custom_call.1} parent=5 // pred_check
        _
      $region26: #{tpu_custom_call.1} parent=5 // pred_check_branch
        %182 = sbr.rel (%p179) target = $region28
      $region27: #{tpu_custom_call.1} parent=5 // pred_region
        %s183 = ssub.s32 %s20, 1
        %s184 = sand.u32 %s56, 1
        %s185 = scalar_lea.sflag [#allocation6], %s184
        %s186 = sand.u32 %s56, 1
        %s187 = smul.addr %s186, 8
        %s188 = scalar_lea.vmem [#allocation5], %s187
        // Predicated region
        $region29: #{tpu_custom_call.1} parent=27 // pred_check
          %p189 = pneg %p69
        $region30: #{tpu_custom_call.1} parent=27 // pred_check_branch
          %191 = sbr.rel (%p189) target = $region32
        $region31: #{tpu_custom_call.1} parent=27 // pred_region
          %192 = dma.done %s185, 128
        $region32: #{tpu_custom_call.1} parent=27 // pred_fallthru
          _
        // Predicated region
        $region33: #{tpu_custom_call.1} parent=27 // pred_check
          %p193 = pneg %p95
        $region34: #{tpu_custom_call.1} parent=27 // pred_check_branch
          %195 = sbr.rel (%p193) target = $region36
        $region35: #{tpu_custom_call.1} parent=27 // pred_region
          %196 = dma.done [#allocation9], 64
        $region36: #{tpu_custom_call.1} parent=27 // pred_fallthru
          _
        %s197 = sand.u32 %s56, 1
        %s198 = scalar_lea.sflag [#allocation6], %s197
        %s199 = sand.u32 %s56, 1
        %s200 = smul.addr %s199, 8
        %s201 = scalar_lea.vmem [#allocation5], %s200
        %p202 = pneg %p69
        %p203 = pneg %p66
        %p204 = pneg %p95
        %p205 = pneg %p92
        %p206 = pneg %p125
        %p207 = pneg %p122
        %s208 = sand.u32 %s112, 1
        %s209 = scalar_lea.sflag [#allocation7], %s208
        %s210 = sand.u32 %s112, 1
        %s211 = smul.addr %s210, 8
        %s212 = scalar_lea.vmem [#allocation10], %s211
        %s213 = smul.u32 %s32, 8
        %s214 = sld [smem:[#allocation4 + %s30]]
        %v215 = vld [vmem:[#allocation8] sm:$0x1]
        %v216 = vmax.f32 %v215, 0.0
        %v217 = vmin.f32 %v216, 1.0
        %v218 = vld [vmem:[#allocation8 + $0x1] sm:$0x1]
        %v219 = vmin.f32 %v218, 1.0
        %v220 = vsub.f32 0.0, %v219
        %v221 = vld [vmem:[#allocation8 + $0x2] sm:$0x1]
        %v222 = vld [vmem:[#allocation8 + $0x3] sm:$0x1]
        %v223 = vmax.f32 %v222, 1.0
        %v224 = vrcp.pop %v223
        %v225 = vmul.f32 1.0, %v224
        %v226 = vpow.f32 %v221, %v225
        %v227 = vsub.f32 1.0, %v217
        %v228 = vmul.f32 %v227, %v227
        %v229 = vmul.f32 %v228, %v228
        %v230 = vlaneseq
        %v231 = vshrl.u32 %v230, 7
        %v232 = vand.u32 %v231, 1
        %vm233 = vcmp.ne.s32.totalorder %v232, 0
        %v234 = vlaneseq
        %v235 = vshrl.u32 %v234, 7
        %v236 = vsub.s32 0, %v235
        %v237 = vrot.slane %v227, %v236
        %v238 = vsel %vm233, %v237, 1.0
        %v239 = vand.u32 %v231, 2
        %vm240 = vcmp.ne.s32.totalorder %v239, 0
        %v241 = vlaneseq
        %v242 = vshrl.u32 %v241, 7
        %v243 = vsub.s32 0, %v242
        %v244 = vrot.slane %v228, %v243
        %v245 = vsel %vm240, %v244, 1.0
        %v246 = vmul.f32 %v238, %v245
        %v247 = vand.u32 %v231, 4
        %vm248 = vcmp.ne.s32.totalorder %v247, 0
        %v249 = vlaneseq
        %v250 = vshrl.u32 %v249, 7
        %v251 = vsub.s32 0, %v250
        %v252 = vrot.slane %v229, %v251
        %v253 = vsel %vm248, %v252, 1.0
        %v254 = vmul.f32 %v246, %v253
        %v255 = vmul.f32 %v254, %v237
        %p256 = scmp.eq.s32.totalorder %s32, 0
        // Predicated region
        $region37: #{tpu_custom_call.1} parent=27 // pred_check
          %p257 = pneg %p256
        $region38: #{tpu_custom_call.1} parent=27 // pred_check_branch
          %259 = sbr.rel (%p257) target = $region40
        $region39: #{tpu_custom_call.1} parent=27 // pred_region
          %v260 = vld [vmem:[%s188] sm:$0x1]
          %p261 = scmp.gt.s32.totalorder %s214, 0
          %s262 = scalar_select %p261, 1.0, 0.0
          %v263 = vstv %s262
          %v264 = vmul.f32 %v260, %v263
          %265 = vst [vmem:[#allocation2] sm:$0x1] %v264
        $region40: #{tpu_custom_call.1} parent=27 // pred_fallthru
          _
        %v266 = vld [vmem:[#allocation2] sm:$0x1]
        %s267 = sadd.s32 %s213, 0
        %v268 = vld [vmem:[%s188] sm:$0xff]
        %v269 = vstv %s267
        %v270 = vadd.s32 %v231, %v269
        %v271 = vstv %s214
        %vm272 = vcmp.lt.s32.totalorder %v270, %v271
        %v273 = vsel %vm272, %v268, 0.0
        %v274 = vlaneseq
        %v275 = vshrl.u32 %v274, 7
        %v276 = vsub.s32 0, %v275
        %v277 = vrot.slane %v217, %v276
        %v278 = vmul.f32 %v277, %v273
        %v279 = vrot.slane %v278, 7
        %vm280 = vcmp.ge.s32.totalorder %v231, 1
        %v281 = vsel %vm280, %v279, 0.0
        %v282 = vmul.f32 %v237, %v281
        %v283 = vadd.f32 %v278, %v282
        %v284 = vrot.slane %v283, 6
        %vm285 = vcmp.ge.s32.totalorder %v231, 2
        %v286 = vsel %vm285, %v284, 0.0
        %v287 = vmul.f32 %v244, %v286
        %v288 = vadd.f32 %v283, %v287
        %v289 = vrot.slane %v288, 4
        %vm290 = vcmp.ge.s32.totalorder %v231, 4
        %v291 = vsel %vm290, %v289, 0.0
        %v292 = vmul.f32 %v252, %v291
        %v293 = vadd.f32 %v288, %v292
        %v295 = vlaneseq
        %v296 = vshrl.u32 %v295, 7
        %v297 = vsub.s32 0, %v296
        %v298 = vrot.slane %v266, %v297
        %v300 = vmul.f32 %v255, %v298
        %v301 = vadd.f32 %v300, %v293
        %v302 = vsel %vm272, %v301, 0.0
        %v303 = vadd.f32 %v302, 1e-06
        %v304 = vlaneseq
        %v305 = vshrl.u32 %v304, 7
        %v306 = vsub.s32 0, %v305
        %v307 = vrot.slane %v220, %v306
        %v308 = vpow.f32 %v303, %v307
        %v309 = vmul.f32 %v273, %v308
        %v310 = vlaneseq
        %v311 = vshrl.u32 %v310, 7
        %v312 = vsub.s32 0, %v311
        %v313 = vrot.slane %v221, %v312
        %v314 = vadd.f32 %v309, %v313
        %v315 = vlaneseq
        %v316 = vshrl.u32 %v315, 7
        %v317 = vsub.s32 0, %v316
        %v318 = vrot.slane %v225, %v317
        %v319 = vpow.f32 %v314, %v318
        %v320 = vlaneseq
        %v321 = vshrl.u32 %v320, 7
        %v322 = vsub.s32 0, %v321
        %v323 = vrot.slane %v226, %v322
        %v324 = vsub.f32 %v319, %v323
        %325 = vst [vmem:[%s212] sm:$0xff] %v324
        %326 = vst [vmem:[#allocation2 - $0x7] sm:$0x80] %v301
        %s327 = sand.u32 %s112, 1
        %s328 = scalar_lea.sflag [#allocation7], %s327
        %s329 = sand.u32 %s112, 1
        %s330 = smul.addr %s329, 8
        %s331 = scalar_lea.vmem [#allocation10], %s330
        // Predicated region
        $region41: #{tpu_custom_call.1} parent=27 // pred_check
          %p332 = pneg %p122
        $region42: #{tpu_custom_call.1} parent=27 // pred_check_branch
          %334 = sbr.rel (%p332) target = $region44
        $region43: #{tpu_custom_call.1} parent=27 // pred_region
          %s336 = ssub.s32 128, 128
          %337 = vsyncadd %s328, %s336
          %s338 = sadd.s32 %s31, %s32
          %s339 = sadd.s32 %s338, %s30
          %s340 = smul.addr %s339, 128
          %s341 = scalar_lea.hbm %s3, %s340
          %s343 = sshll.u32 %s331, 4
          %s344 = int_to_ptr.vmem [resolvable:$true] %s343
          %346 = dma.vmem_to_hbm [thread:$0]  %s344, 128, %s341, %s328
        $region44: #{tpu_custom_call.1} parent=27 // pred_fallthru
          _
      $region28: #{tpu_custom_call.1} parent=5 // pred_fallthru
        _
      %p347 = scmp.le.s32.totalorder 2, %s20
      // Predicated region
      $region45: #{tpu_custom_call.1} parent=5 // pred_check
        %p348 = pneg %p347
      $region46: #{tpu_custom_call.1} parent=5 // pred_check_branch
        %350 = sbr.rel (%p348) target = $region48
      $region47: #{tpu_custom_call.1} parent=5 // pred_region
        %s351 = ssub.s32 %s20, 2
        // Predicated region
        $region49: #{tpu_custom_call.1} parent=47 // pred_check
          %p352 = pneg %p128
        $region50: #{tpu_custom_call.1} parent=47 // pred_check_branch
          %354 = sbr.rel (%p352) target = $region52
        $region51: #{tpu_custom_call.1} parent=47 // pred_region
          %s355 = sand.u32 %s113, 1
          %s356 = scalar_lea.sflag [#allocation7], %s355
          %s357 = sand.u32 %s113, 1
          %s358 = smul.addr %s357, 8
          %s359 = scalar_lea.vmem [#allocation10], %s358
          %360 = dma.done %s356, 128
        $region52: #{tpu_custom_call.1} parent=47 // pred_fallthru
          _
      $region48: #{tpu_custom_call.1} parent=5 // pred_fallthru
        _
    $region6: #{tpu_custom_call.1} parent=1 // loop_footer
      %s24 = sadd.s32 1, %s20
    $region7: #{tpu_custom_call.1} parent=1 // loop_footer_branch
      %19 = sbr.rel target = $region3
    $region8: #{tpu_custom_call.1} parent=1 // loop_exit
      _
    %361 = vsyncpa [#allocation6], 1
    %s362 = scalar_lea.sflag [#allocation6], 1
    %363 = vsyncpa %s362, 1
    %364 = vsyncpa [#allocation9], 1
    %365 = vsyncpa [#allocation7], 1
    %s366 = scalar_lea.sflag [#allocation7], 1
    %367 = vsyncpa %s366, 1

</llo_original>
